<compile_context>
chip_gen: v5e
topology: v5e:2x2
jax: 0.10.0
libtpu: 0.0.40
codegen_flags: <defaults>
</compile_context>

<pallas_src>
import jax
import jax.numpy as jnp
from jax.experimental import pallas as pl
from jax.experimental.pallas import tpu as pltpu

_LANES = 128      # vreg lane width   (last block dim multiple)
_SUBLANES = 8     # f32 sublane count (second-to-last block dim multiple)


def _logreg_kernel(w_ref, b_ref, x_ref, o_ref):
    """Elementwise affine + sigmoid on a lane-dense [tile, 128] slab.

    w_ref, b_ref: SMEM (1,) scalars.  x_ref, o_ref: VMEM [tile, 128].
    """
    w = w_ref[0]
    b = b_ref[0]
    x = x_ref[...].astype(jnp.float32)           # in-kernel cast (free VPU work)
    z = x * w + b
    # jax.nn.sigmoid lowers to a numerically stable EUP exp + reciprocal,
    # keeping the VALU slot free -> kernel stays purely HBM-bandwidth bound.
    o_ref[...] = jax.nn.sigmoid(z).astype(o_ref.dtype)


def _round_up(v, m):
    return ((v + m - 1) // m) * m


def _sublane_multiple(dtype):
    # f32 -> 8, bf16 -> 16, int8/fp8 -> 32 (packed-dtype tiling rule).
    return max(_SUBLANES, 32 // jnp.dtype(dtype).itemsize)


def logistic_regression_forward(x, w, b, *, tile_rows=4096, min_pallas_n=16384):
    """x: [N, 1] floats, w: [1, 1] (PyTorch Linear weight), b: [1]. Returns [N, 1].

    tile_rows:    rows (of 128 lanes) per grid step; 4096 -> 2 MiB f32 block.
    min_pallas_n: batches smaller than this use a fused XLA path (launch
                  overhead dwarfs the work at tiny N). Pass 0 to force Pallas.
    """
    n = x.shape[0]
    out_dtype = x.dtype
    w_s = jnp.asarray(w, jnp.float32).reshape((1,))
    b_s = jnp.asarray(b, jnp.float32).reshape((1,))

    if n < min_pallas_n:
        # Tiny-batch fallback: plain XLA fused elementwise is strictly faster.
        y = jax.nn.sigmoid(x.astype(jnp.float32) * w_s[0] + b_s[0])
        return y.astype(out_dtype).reshape(n, 1)

    # --- Lane-dense layout -------------------------------------------------
    # Fast path: N already a multiple of 128 -> metadata-only reshape, no
    # extra HBM passes.  Ragged N: pad to the next multiple of 128 only.
    aligned = (n % _LANES) == 0
    if aligned:
        n_pad = n
        x2d = x.reshape(n // _LANES, _LANES)
    else:
        n_pad = _round_up(n, _LANES)
        x_flat = jnp.pad(x.reshape(-1), (0, n_pad - n))   # tail sliced off below
        x2d = x_flat.reshape(n_pad // _LANES, _LANES)
    rows = n_pad // _LANES

    # --- Tile selection ----------------------------------------------------
    sub = _sublane_multiple(out_dtype)
    tile = min(tile_rows, rows)
    if tile < rows:
        # Partial blocks must keep the sublane dim a multiple of the dtype tile;
        # a ragged last block is fine (OOB reads discarded, OOB writes masked).
        tile = _round_up(tile, sub)
        if tile >= rows:
            tile = rows
    num_blocks = pl.cdiv(rows, tile)
    # If one block would cover everything, split so the "parallel" grid axis
    # actually gives both v7x TensorCores work (no effect on v5e/v6e).
    if num_blocks == 1 and rows >= 2 * sub:
        half = _round_up(pl.cdiv(rows, 2), sub)
        if half < rows:
            tile = half
            num_blocks = pl.cdiv(rows, tile)
    grid = (num_blocks,)

    y2d = pl.pallas_call(
        _logreg_kernel,
        out_shape=jax.ShapeDtypeStruct((rows, _LANES), out_dtype),
        grid=grid,
        in_specs=[
            pl.BlockSpec(memory_space=pltpu.SMEM),             # w scalar (1,)
            pl.BlockSpec(memory_space=pltpu.SMEM),             # b scalar (1,)
            pl.BlockSpec((tile, _LANES), lambda i: (i, 0)),    # x tile
        ],
        out_specs=pl.BlockSpec((tile, _LANES), lambda i: (i, 0)),
        compiler_params=pltpu.CompilerParams(
            # Independent output tiles: shard grid across TensorCores (2 on v7x).
            dimension_semantics=("parallel",),
        ),
    )(w_s, b_s, x2d)

    if aligned:
        # Zero-copy: reshape back to [N, 1] (metadata only).
        return y2d.reshape(n, 1)
    # Ragged N: drop padded tail so garbage never escapes.
    return y2d.reshape(n_pad, 1)[:n]


if __name__ == "__main__":
    key = jax.random.PRNGKey(0)
    kx, kw, kb = jax.random.split(key, 3)

    # torch.nn.Linear(1, 1)-style init: uniform(-1, 1) since fan_in = 1.
    w = jax.random.uniform(kw, (1, 1), dtype=jnp.float32, minval=-1.0, maxval=1.0)
    b = jax.random.uniform(kb, (1,), dtype=jnp.float32, minval=-1.0, maxval=1.0)

    def ref(xx):
        return jax.nn.sigmoid(xx.astype(jnp.float32) @ w.T + b)

    # Case 1: ragged N (not a multiple of 128) -> pad + slice path, grid = 1.
    n1 = 1000
    x1 = jax.random.normal(kx, (n1, 1), dtype=jnp.float32)
    y1 = jax.block_until_ready(
        logistic_regression_forward(x1, w, b, min_pallas_n=0))
    assert y1.shape == (n1, 1)
    assert jnp.allclose(y1, ref(x1), atol=1e-5), "mismatch vs reference (case 1)"

    # Case 2: small explicit tile (tile_rows=8 -> grid of 3) to exercise the
    # pipelined multi-block path while staying small.
    n2 = 3000
    x2 = jax.random.normal(kx, (n2, 1), dtype=jnp.float32)
    y2 = jax.block_until_ready(
        logistic_regression_forward(x2, w, b, tile_rows=8, min_pallas_n=0))
    assert y2.shape == (n2, 1)
    assert jnp.allclose(y2, ref(x2), atol=1e-5), "mismatch vs reference (case 2)"

    # Case 3: 128-aligned N -> zero-copy fast path + 2-way grid split.
    n3 = 2048
    x3 = jax.random.normal(kx, (n3, 1), dtype=jnp.float32)
    y3 = jax.block_until_ready(
        logistic_regression_forward(x3, w, b, min_pallas_n=0))
    assert y3.shape == (n3, 1)
    assert jnp.allclose(y3, ref(x3), atol=1e-5), "mismatch vs reference (case 3)"

    # Case 4: bf16 I/O path (f32 compute in-kernel), looser tolerance.
    n4 = 4096
    x4 = jax.random.normal(kx, (n4, 1), dtype=jnp.float32).astype(jnp.bfloat16)
    y4 = jax.block_until_ready(
        logistic_regression_forward(x4, w, b, min_pallas_n=0))
    assert y4.shape == (n4, 1) and y4.dtype == jnp.bfloat16
    assert jnp.allclose(y4.astype(jnp.float32), ref(x4), atol=2e-2), \
        "mismatch vs reference (case 4, bf16)"

    print("KERNEL_OK")
</pallas_src>

<mosaic_0001>
module attributes {stable_mosaic.version = 11 : i64} {
  func.func @_logreg_kernel(%arg0: i32, %arg1: memref<1xf32, #tpu.memory_space<smem>>, %arg2: memref<1xf32, #tpu.memory_space<smem>>, %arg3: memref<8x128xf32, #tpu.memory_space<vmem>>, %arg4: memref<8x128xf32, #tpu.memory_space<vmem>>) attributes {dimension_semantics = [#tpu.dimension_semantics<parallel>], iteration_bounds = array<i64: 1>, scalar_prefetch = 0 : i64, scratch_operands = 0 : i64, tpu.core_type = #tpu.core_type<tc>, window_params = [{transform_indices = @transform_0, window_bounds = array<i64: 1>}, {transform_indices = @transform_1, window_bounds = array<i64: 1>}, {transform_indices = @transform_2, window_bounds = array<i64: 8, 128>}, {transform_indices = @transform_3, window_bounds = array<i64: 8, 128>}]} {
    %c0 = arith.constant 0 : index
    %0 = memref.load %arg1[%c0] : memref<1xf32, #tpu.memory_space<smem>>
    %c0_0 = arith.constant 0 : index
    %1 = memref.load %arg2[%c0_0] : memref<1xf32, #tpu.memory_space<smem>>
    %c0_1 = arith.constant 0 : index
    %c0_2 = arith.constant 0 : index
    %2 = vector.load %arg3[%c0_1, %c0_2] : memref<8x128xf32, #tpu.memory_space<vmem>>, vector<8x128xf32>
    %3 = vector.broadcast %0 : f32 to vector<8x128xf32>
    %4 = arith.mulf %2, %3 : vector<8x128xf32>
    %5 = vector.broadcast %1 : f32 to vector<8x128xf32>
    %6 = arith.addf %4, %5 : vector<8x128xf32>
    %7 = arith.negf %6 : vector<8x128xf32>
    %8 = math.exp %7 : vector<8x128xf32>
    %cst = arith.constant 1.000000e+00 : f32
    %9 = vector.broadcast %cst : f32 to vector<8x128xf32>
    %10 = arith.addf %9, %8 : vector<8x128xf32>
    %11 = arith.divf %9, %10 : vector<8x128xf32>
    %c0_3 = arith.constant 0 : index
    %c0_4 = arith.constant 0 : index
    %12 = vector.load %arg4[%c0_3, %c0_4] : memref<8x128xf32, #tpu.memory_space<vmem>>, vector<8x128xf32>
    tpu.vector_store %arg4[%c0_3, %c0_4], %11 {strides = array<i32>} : memref<8x128xf32, #tpu.memory_space<vmem>>, vector<8x128xf32>,
    return
  }
  func.func @transform_0(%arg0: i32) -> i32 {
    %c0_i32 = arith.constant 0 : i32
    %c0_i32_0 = arith.constant 0 : i32
    return %c0_i32 : i32
  }
  func.func @transform_1(%arg0: i32) -> i32 {
    %c0_i32 = arith.constant 0 : i32
    %c0_i32_0 = arith.constant 0 : i32
    return %c0_i32 : i32
  }
  func.func @transform_2(%arg0: i32) -> (i32, i32) {
    %c0_i32 = arith.constant 0 : i32
    %c0_i32_0 = arith.constant 0 : i32
    return %arg0, %c0_i32 : i32, i32
  }
  func.func @transform_3(%arg0: i32) -> (i32, i32) {
    %c0_i32 = arith.constant 0 : i32
    %c0_i32_0 = arith.constant 0 : i32
    return %arg0, %c0_i32 : i32, i32
  }
}

</mosaic_0001>

<llo_original>
// kernel: tpu_custom_call.1
$region0: #{tpu_custom_call.1}
  #allocation0 [shape = 'u32[]', space=smem, size = 0x4, offset = 0x4, fixed_abs, tag = 'smem constant byte address 0x4 - core index']
  #allocation1 [shape = 'u32[72,128]{1,0:T(1,128)}', space=vmem, size = 0x9000, scoped, tag = 'internal scratch']
  #allocation2 [shape = 'f32[1]{0:T(128)S(6)}', space=smem, size = 0x200, scoped, tag = 'scoped memory for tpu_custom_call.1']
  #allocation3 [shape = 'f32[1]{0:T(128)S(6)}', space=smem, size = 0x200, scoped, tag = 'scoped memory for tpu_custom_call.1']
  %s0 = inlined_call_operand.<no memory space> [shape: f32[1], index: 0, kind: input, shape index: {}]
  %s1 = inlined_call_operand.<no memory space> [shape: f32[1], index: 1, kind: input, shape index: {}]
  %s2 = inlined_call_operand.hbm [shape: f32[8,128], index: 2, kind: input, shape index: {}]
  %s3 = inlined_call_operand.hbm [shape: f32[8,128], index: 3, kind: output, shape index: {}]
  %s4 = sld [smem:[#allocation0]]
  $region26: #{tpu_custom_call.1} parent=0
    _
  %s6 = ssub.s32 1, %s4
  %s7 = scalar_select 0, %s6, %s4
  %8 = sst [smem:[#allocation2]] %s0
  %9 = sst [smem:[#allocation3]] %s1
  $region1: #{tpu_custom_call.1} parent=0
    #allocation4 [shape = 'u8[4096]{0}', space=vmem, size = 0x1000, scoped, tag = 'input window, operand 2, single buffered']
    #allocation5 [shape = 's32[1]{0}', space=sflag, size = 0x4, scoped, tag = 'scoped memory for tpu_custom_call.1']
    #allocation6 [shape = 's32[1]{0}', space=sflag, size = 0x4, scoped, tag = 'scoped memory for tpu_custom_call.1']
    #allocation7 [shape = 'u8[4096]{0}', space=vmem, size = 0x1000, scoped, tag = 'output window, operand 0, single buffered']
    %10 = vsyncpa [#allocation5], 0
    %11 = vsyncpa [#allocation6], 0
    // Predicated region
    $region2: #{tpu_custom_call.1} parent=1 // pred_check
      _
    $region3: #{tpu_custom_call.1} parent=1 // pred_check_branch
      %13 = sbr.rel (0) target = $region5
    $region4: #{tpu_custom_call.1} parent=1 // pred_region
      _
    $region5: #{tpu_custom_call.1} parent=1 // pred_fallthru
      _
    // Predicated region
    $region6: #{tpu_custom_call.1} parent=1 // pred_check
      _
    $region7: #{tpu_custom_call.1} parent=1 // pred_check_branch
      %15 = sbr.rel (0) target = $region9
    $region8: #{tpu_custom_call.1} parent=1 // pred_region
      _
    $region9: #{tpu_custom_call.1} parent=1 // pred_fallthru
      _
    // Predicated region
    $region10: #{tpu_custom_call.1} parent=1 // pred_check
      _
    $region11: #{tpu_custom_call.1} parent=1 // pred_check_branch
      %17 = sbr.rel (0) target = $region13
    $region12: #{tpu_custom_call.1} parent=1 // pred_region
      %19 = vsyncadd [#allocation5], 0
      %s21 = sshll.u32 %s2, 4
      %s22 = int_to_ptr.hbm [resolvable:$true] %s21
      %s23 = sshll.u32 [#allocation4], 4
      %s24 = int_to_ptr.vmem [resolvable:$true] %s23
      %26 = dma.hbm_to_vmem [thread:$0]  %s22, 128, %s24, [#allocation5]
    $region13: #{tpu_custom_call.1} parent=1 // pred_fallthru
      _
    // Predicated region
    $region14: #{tpu_custom_call.1} parent=1 // pred_check
      _
    $region15: #{tpu_custom_call.1} parent=1 // pred_check_branch
      %28 = sbr.rel (0) target = $region17
    $region16: #{tpu_custom_call.1} parent=1 // pred_region
      %30 = dma.done [#allocation5], 128
    $region17: #{tpu_custom_call.1} parent=1 // pred_fallthru
      _
    %s31 = sld [smem:[#allocation2]]
    %s32 = sld [smem:[#allocation3]]
    %v33 = vld [vmem:[#allocation4] sm:$0xff]
    %v34 = vstv %s31
    %v35 = vmul.f32 %v33, %v34
    %v36 = vstv %s32
    %v37 = vadd.f32 %v35, %v36
    %v38 = vxor.u32 %v37, 2147483648
    %v39 = vmul.f32 %v38, 1.442695
    %v40 = vpow.pop %v39
    %v41 = vadd.f32 %v40, 1.0
    %v42 = vrcp.pop %v41
    %v43 = vmul.f32 %v41, %v42
    %v44 = vsub.f32 1.0, %v43
    %v45 = vmul.f32 %v42, %v44
    %v46 = vadd.f32 %v42, %v45
    %vm47 = vweird.f32 %v41
    %vm48 = vweird.f32 %v42
    %vm49 = vmor %vm47, %vm48
    %v50 = vsel %vm49, %v42, %v46
    %v51 = vand.u32 2147483647, %v41
    %vm52 = vcmp.eq.f32.partialorder %v51, 8.507059e+37
    %v53 = vand.u32 %v41, 2147483648
    %v54 = vor.u32 1.1754944e-38, %v53
    %v55 = vsel %vm52, %v54, %v50
    %v56 = vmul.f32 1.0, %v55
    %57 = vst [vmem:[#allocation7] sm:$0xff] %v56
    // Predicated region
    $region18: #{tpu_custom_call.1} parent=1 // pred_check
      _
    $region19: #{tpu_custom_call.1} parent=1 // pred_check_branch
      %59 = sbr.rel (0) target = $region21
    $region20: #{tpu_custom_call.1} parent=1 // pred_region
      %61 = vsyncadd [#allocation6], 0
      %s63 = sshll.u32 [#allocation7], 4
      %s64 = int_to_ptr.vmem [resolvable:$true] %s63
      %s65 = sshll.u32 %s3, 4
      %s66 = int_to_ptr.hbm [resolvable:$true] %s65
      %68 = dma.vmem_to_hbm [thread:$0]  %s64, 128, %s66, [#allocation6]
    $region21: #{tpu_custom_call.1} parent=1 // pred_fallthru
      _
    // Predicated region
    $region22: #{tpu_custom_call.1} parent=1 // pred_check
      _
    $region23: #{tpu_custom_call.1} parent=1 // pred_check_branch
      %70 = sbr.rel (0) target = $region25
    $region24: #{tpu_custom_call.1} parent=1 // pred_region
      %72 = dma.done [#allocation6], 128
    $region25: #{tpu_custom_call.1} parent=1 // pred_fallthru
      _
    %73 = vsyncpa [#allocation5], 1
    %74 = vsyncpa [#allocation6], 1

</llo_original>
